<compile_context>
chip_gen: v7x
topology: tpu7x:2x2x1
jax: 0.10.0
libtpu: 0.0.40
codegen_flags: <defaults>
</compile_context>

<pallas_src>
import numpy as np
import jax
import jax.numpy as jnp
from jax.experimental import pallas as pl
from jax.experimental.pallas import tpu as pltpu


def _round_up(x, m):
    return ((x + m - 1) // m) * m


def build_dec_call(T, B, S, E, H, D, A, V, is_train):
    """Builds a pallas_call implementing Dec.forward for fixed static shapes."""
    Vp = _round_up(V, 128)  # lane-dense vocab padding

    def kernel(gt_ref, enc_ref, uh_ref, wh_ref, bws_ref, wv_ref, bv_ref,
               wie_ref, wid_ref, bg_ref, wfc_ref, bfc_ref, emb_ref,
               logits_ref, pred_ref,
               hx, cx, emb_sc, pred_sc):
        t = pl.program_id(0)
        nT = pl.num_programs(0)

        # ---- one-time init: hx = cx = 0; inference seeds emb_sc with gt[0] ----
        @pl.when(t == 0)
        def _init():
            hx[...] = jnp.zeros_like(hx)
            cx[...] = jnp.zeros_like(cx)
            if not is_train:
                emb_sc[...] = gt_ref[0]                     # (B, D) bf16

        # ---- fused hx matmul: [gates_hh | ws] in one MXU pass (pre-update hx) ----
        hx_proj = jnp.dot(hx[...].astype(jnp.bfloat16), wh_ref[...],
                          preferred_element_type=jnp.float32)       # (B, 4H+A)
        gates_h = hx_proj[:, :4 * H]                                 # 128-aligned split
        ws = hx_proj[:, 4 * H:] + bws_ref[...]                       # (B, A)

        # ---- Bahdanau attention: score on VPU/XLU (no N=1 MXU matmul) ----
        summ = jnp.tanh(uh_ref[...].astype(jnp.float32) + ws[:, None, :])   # (B, S, A)
        score = jnp.sum(summ * wv_ref[...], axis=-1) + bv_ref[...]          # (B, S)
        score = score - jnp.max(score, axis=-1, keepdims=True)
        es = jnp.exp(score)
        attw = es * pl.reciprocal(jnp.sum(es, axis=-1, keepdims=True), approx=True)
        atten = jnp.sum(attw[:, :, None] * enc_ref[...].astype(jnp.float32),
                        axis=1)                                      # (B, E) f32

        # ---- decoder input: teacher forcing vs. previous greedy embedding ----
        if is_train:
            emb_in = gt_ref[0]                                       # (B, D) bf16
        else:
            emb_in = emb_sc[...]                                     # (B, D) bf16

        # ---- LSTMCell: two MXU pushes (no lane concat), folded biases ----
        gates = (jnp.dot(atten.astype(jnp.bfloat16), wie_ref[...],
                         preferred_element_type=jnp.float32)
                 + jnp.dot(emb_in, wid_ref[...],
                           preferred_element_type=jnp.float32)
                 + gates_h + bg_ref[...])                            # (B, 4H)
        i_g = jax.nn.sigmoid(gates[:, 0:H])
        f_g = jax.nn.sigmoid(gates[:, H:2 * H])
        g_g = jnp.tanh(gates[:, 2 * H:3 * H])
        o_g = jax.nn.sigmoid(gates[:, 3 * H:4 * H])
        c_new = f_g * cx[...] + i_g * g_g
        h_new = o_g * jnp.tanh(c_new)
        cx[...] = c_new
        hx[...] = h_new

        # ---- output projection (lane-dense Vp) + greedy argmax ----
        logits = jnp.dot(h_new.astype(jnp.bfloat16), wfc_ref[...],
                         preferred_element_type=jnp.float32) + bfc_ref[...]  # (B, Vp)
        logits_ref[0] = logits

        iota = jax.lax.broadcasted_iota(jnp.int32, (B, Vp), 1)       # free VPU work
        maxv = jnp.max(logits, axis=-1, keepdims=True)
        pred = jnp.min(jnp.where(logits == maxv, iota, Vp),
                       axis=-1, keepdims=True).astype(jnp.int32)     # (B, 1) lowest idx
        pred_ref[t] = pred          # resident output block; single writeback at grid end

        if not is_train:
            pred_sc[...] = pred
            # greedy feedback: row gather of the B predicted embedding rows
            # (replaces the old (B,Vp)@(Vp,D) one-hot matmul)
            @pl.when(t + 1 < nT)
            def _feedback():
                for b in range(B):                                   # B is small/static
                    idx = pred_sc[b, 0]                              # scalar from VMEM
                    emb_sc[pl.ds(b, 1), :] = emb_ref[pl.ds(idx, 1), :]

    def _vmem_const():
        # whole-array, single-copy VMEM residency for constant operands
        return pl.BlockSpec(memory_space=pltpu.MemorySpace.VMEM)

    if is_train:
        gt_spec = pl.BlockSpec((1, B, D), lambda t: (t, 0, 0))
    else:
        # only gt[0] is ever read in inference mode
        gt_spec = pl.BlockSpec((1, B, D), lambda t: (0, 0, 0))

    in_specs = [
        gt_spec,            # gt embeddings (T, B, D) bf16
        _vmem_const(),      # encoder (B, S, E) bf16
        _vmem_const(),      # Uh (B, S, A) bf16 (hoisted)
        _vmem_const(),      # fused [Whh^T | Wws^T] (H, 4H+A) bf16
        _vmem_const(),      # bws (1, A) f32
        _vmem_const(),      # atten_v row (1, A) f32
        _vmem_const(),      # bv (1, 1) f32
        _vmem_const(),      # Wih^T[:E] (E, 4H) bf16
        _vmem_const(),      # Wih^T[E:] (D, 4H) bf16
        _vmem_const(),      # bih + bhh (1, 4H) f32
        _vmem_const(),      # Wfc^T padded (H, Vp) bf16
        _vmem_const(),      # bfc padded (1, Vp) f32
        _vmem_const(),      # embedding table padded (Vp, D) bf16
    ]
    out_specs = [
        pl.BlockSpec((1, B, Vp), lambda t: (t, 0, 0)),   # per-step lane-dense logits
        pl.BlockSpec((T, B, 1), lambda t: (0, 0, 0)),    # resident preds, write-once
    ]
    out_shape = [
        jax.ShapeDtypeStruct((T, B, Vp), jnp.float32),
        jax.ShapeDtypeStruct((T, B, 1), jnp.int32),
    ]
    scratch_shapes = [
        pltpu.VMEM((B, H), jnp.float32),      # hx
        pltpu.VMEM((B, H), jnp.float32),      # cx
        pltpu.VMEM((B, D), jnp.bfloat16),     # previous-prediction embedding
        pltpu.VMEM((B, 1), jnp.int32),        # per-row predicted index
    ]

    # Explicit VMEM budget (default scoped limit is only 16/32 MiB).
    const_bytes = (2 * (B * S * E + B * S * A + H * (4 * H + A)
                        + E * 4 * H + D * 4 * H + H * Vp + Vp * D)
                   + 4 * (A + A + 1 + 4 * H + Vp))
    stream_bytes = 2 * (2 * B * D) + 4 * (2 * B * Vp) + 4 * T * B
    scratch_bytes = 4 * B * H * 2 + 2 * B * D + 4 * B
    vmem_limit = int(min(100 * 2**20,
                         max(32 * 2**20,
                             2 * (const_bytes + stream_bytes + scratch_bytes) + (4 << 20))))

    return pl.pallas_call(
        kernel,
        out_shape=out_shape,
        grid_spec=pltpu.PrefetchScalarGridSpec(
            num_scalar_prefetch=0,
            grid=(T,),
            in_specs=in_specs,
            out_specs=out_specs,
            scratch_shapes=scratch_shapes),
        compiler_params=pltpu.CompilerParams(
            dimension_semantics=("arbitrary",),
            vmem_limit_bytes=vmem_limit),
    )


def dec_forward(params, encoder, gtruth_ids, is_train):
    """JAX wrapper mirroring Dec.forward.  Returns (logits (T,B,V), predic (B,T))."""
    B, S, E = encoder.shape
    T = gtruth_ids.shape[1]
    V, D = params['emb'].shape
    A, H = params['Wws'].shape
    Vp = _round_up(V, 128)
    f32, bf16 = jnp.float32, jnp.bfloat16

    # glue: embedding lookup of ground-truth ids + seq-major transpose
    gt_emb = jnp.transpose(params['emb'][gtruth_ids], (1, 0, 2)).astype(bf16)  # (T,B,D)

    # hoisted Uh = atten_uh(encoder) (f32 matmul in XLA, stored bf16)
    uh = (jnp.einsum('bse,ae->bsa', encoder.astype(f32), params['Wuh'].astype(f32))
          + params['buh']).astype(bf16)                                        # (B,S,A)

    # fused / split / padded weights (bf16 MXU operands, f32 biases)
    wh = jnp.concatenate([params['Whh'].T, params['Wws'].T], axis=1).astype(bf16)  # (H,4H+A)
    bg = (params['bih'] + params['bhh']).reshape(1, 4 * H).astype(f32)
    wih_t = params['Wih'].T                                                     # (E+D, 4H)
    wie = wih_t[:E].astype(bf16)                                                # (E, 4H)
    wid = wih_t[E:].astype(bf16)                                                # (D, 4H)
    wfc_p = jnp.pad(params['Wfc'].T, ((0, 0), (0, Vp - V))).astype(bf16)        # (H, Vp)
    bfc_p = jnp.pad(params['bfc'], (0, Vp - V),
                    constant_values=-1e9).reshape(1, Vp).astype(f32)            # pads never argmax
    emb_p = jnp.pad(params['emb'], ((0, Vp - V), (0, 0))).astype(bf16)          # (Vp, D)

    call = build_dec_call(T, B, S, E, H, D, A, V, is_train)
    logits_p, preds = call(
        gt_emb,
        encoder.astype(bf16),
        uh,
        wh, params['bws'].reshape(1, A).astype(f32),
        params['Wv'].reshape(1, A).astype(f32), params['bv'].reshape(1, 1).astype(f32),
        wie, wid, bg,
        wfc_p, bfc_p,
        emb_p,
    )
    return logits_p[:, :, :V], jnp.transpose(preds[:, :, 0], (1, 0))  # (T,B,V), (B,T)


def dec_reference(params, encoder, gtruth_ids, is_train):
    """Pure-JAX f32 reference of the PyTorch forward (deterministic branches)."""
    B, S, E = encoder.shape
    T = gtruth_ids.shape[1]
    H = params['Whh'].shape[1]
    gt = jnp.transpose(params['emb'][gtruth_ids], (1, 0, 2))        # (T,B,D)
    hx = jnp.zeros((B, H), jnp.float32)
    cx = jnp.zeros((B, H), jnp.float32)
    Uh = jnp.einsum('bse,ae->bsa', encoder, params['Wuh']) + params['buh']
    logits_all, preds_all = [], []
    prev_pred = None
    for i in range(T):
        ws = hx @ params['Wws'].T + params['bws']
        summ = jnp.tanh(Uh + ws[:, None, :])
        score = jnp.einsum('bsa,a->bs', summ, params['Wv'][0]) + params['bv'][0]
        attw = jax.nn.softmax(score, axis=-1)
        atten = jnp.einsum('bs,bse->be', attw, encoder)
        if is_train or i == 0:
            emb_in = gt[i]
        else:
            emb_in = params['emb'][prev_pred]
        inp = jnp.concatenate([atten, emb_in], axis=-1)
        gates = (inp @ params['Wih'].T + params['bih']
                 + hx @ params['Whh'].T + params['bhh'])
        i_g, f_g, g_g, o_g = jnp.split(gates, 4, axis=-1)
        cx = jax.nn.sigmoid(f_g) * cx + jax.nn.sigmoid(i_g) * jnp.tanh(g_g)
        hx = jax.nn.sigmoid(o_g) * jnp.tanh(cx)
        lg = hx @ params['Wfc'].T + params['bfc']
        prev_pred = jnp.argmax(lg, axis=-1)
        logits_all.append(lg)
        preds_all.append(prev_pred)
    return jnp.stack(logits_all, 0), jnp.stack(preds_all, 1)


if __name__ == "__main__":
    # small shapes: batch=2, src_len=8, tgt_len=6, zh_dims=16, zh_voc=64,
    # zh_hidden=32, enc_hidden=32, atten_vec_size=32
    B, S, T = 2, 8, 6
    D, V, H, E, A = 16, 64, 32, 32, 32

    key = jax.random.PRNGKey(0)
    ks = jax.random.split(key, 16)
    sc = 0.1
    params = {
        'emb': jax.random.normal(ks[0], (V, D), jnp.float32) * sc,
        'Wws': jax.random.normal(ks[1], (A, H), jnp.float32) * sc,
        'bws': jax.random.normal(ks[2], (A,), jnp.float32) * sc,
        'Wuh': jax.random.normal(ks[3], (A, E), jnp.float32) * sc,
        'buh': jax.random.normal(ks[4], (A,), jnp.float32) * sc,
        'Wv': jax.random.normal(ks[5], (1, A), jnp.float32) * sc,
        'bv': jax.random.normal(ks[6], (1,), jnp.float32) * sc,
        'Wih': jax.random.normal(ks[7], (4 * H, E + D), jnp.float32) * sc,
        'bih': jax.random.normal(ks[8], (4 * H,), jnp.float32) * sc,
        'Whh': jax.random.normal(ks[9], (4 * H, H), jnp.float32) * sc,
        'bhh': jax.random.normal(ks[10], (4 * H,), jnp.float32) * sc,
        'Wfc': jax.random.normal(ks[11], (V, H), jnp.float32) * sc,
        'bfc': jax.random.normal(ks[12], (V,), jnp.float32) * sc,
    }
    encoder = jax.random.normal(ks[13], (B, S, E), jnp.float32)
    gtruth_ids = jax.random.randint(ks[14], (B, T), 0, V, jnp.int32)

    # training mode (teacher forcing branch); tolerance accounts for bf16 MXU
    # operands and the approx reciprocal in the softmax
    logits_tr, preds_tr = dec_forward(params, encoder, gtruth_ids, is_train=True)
    jax.block_until_ready(logits_tr)
    ref_logits, ref_preds = dec_reference(params, encoder, gtruth_ids, is_train=True)
    np.testing.assert_allclose(np.asarray(logits_tr), np.asarray(ref_logits),
                               atol=1e-2, rtol=2e-2)

    # inference mode (greedy feedback of previous prediction via row gather)
    logits_inf, preds_inf = dec_forward(params, encoder, gtruth_ids, is_train=False)
    jax.block_until_ready(logits_inf)
    jax.block_until_ready(preds_inf)

    print("KERNEL_OK")
</pallas_src>

<mosaic_0001>
module attributes {stable_mosaic.version = 11 : i64} {
  func.func @kernel(%arg0: i32, %arg1: memref<1x2x16xbf16, #tpu.memory_space<vmem>>, %arg2: memref<2x8x32xbf16, #tpu.memory_space<vmem>>, %arg3: memref<2x8x32xbf16, #tpu.memory_space<vmem>>, %arg4: memref<32x160xbf16, #tpu.memory_space<vmem>>, %arg5: memref<1x32xf32, #tpu.memory_space<vmem>>, %arg6: memref<1x32xf32, #tpu.memory_space<vmem>>, %arg7: memref<1x1xf32, #tpu.memory_space<vmem>>, %arg8: memref<32x128xbf16, #tpu.memory_space<vmem>>, %arg9: memref<16x128xbf16, #tpu.memory_space<vmem>>, %arg10: memref<1x128xf32, #tpu.memory_space<vmem>>, %arg11: memref<32x128xbf16, #tpu.memory_space<vmem>>, %arg12: memref<1x128xf32, #tpu.memory_space<vmem>>, %arg13: memref<128x16xbf16, #tpu.memory_space<vmem>>, %arg14: memref<1x2x128xf32, #tpu.memory_space<vmem>>, %arg15: memref<6x2x1xi32, #tpu.memory_space<vmem>>, %arg16: memref<2x32xf32, #tpu.memory_space<vmem>>, %arg17: memref<2x32xf32, #tpu.memory_space<vmem>>, %arg18: memref<2x16xbf16, #tpu.memory_space<vmem>>, %arg19: memref<2x1xi32, #tpu.memory_space<vmem>>) attributes {dimension_semantics = [#tpu.dimension_semantics<arbitrary>], iteration_bounds = array<i64: 6>, scalar_prefetch = 0 : i64, scratch_operands = 4 : i64, tpu.core_type = #tpu.core_type<tc>, window_params = [{transform_indices = @transform_0, window_bounds = array<i64: 1, 2, 16>}, {pipeline_mode = #tpu.pipeline_mode<synchronous>, transform_indices = @transform_1, window_bounds = array<i64: 2, 8, 32>}, {pipeline_mode = #tpu.pipeline_mode<synchronous>, transform_indices = @transform_2, window_bounds = array<i64: 2, 8, 32>}, {pipeline_mode = #tpu.pipeline_mode<synchronous>, transform_indices = @transform_3, window_bounds = array<i64: 32, 160>}, {pipeline_mode = #tpu.pipeline_mode<synchronous>, transform_indices = @transform_4, window_bounds = array<i64: 1, 32>}, {pipeline_mode = #tpu.pipeline_mode<synchronous>, transform_indices = @transform_5, window_bounds = array<i64: 1, 32>}, {pipeline_mode = #tpu.pipeline_mode<synchronous>, transform_indices = @transform_6, window_bounds = array<i64: 1, 1>}, {pipeline_mode = #tpu.pipeline_mode<synchronous>, transform_indices = @transform_7, window_bounds = array<i64: 32, 128>}, {pipeline_mode = #tpu.pipeline_mode<synchronous>, transform_indices = @transform_8, window_bounds = array<i64: 16, 128>}, {pipeline_mode = #tpu.pipeline_mode<synchronous>, transform_indices = @transform_9, window_bounds = array<i64: 1, 128>}, {pipeline_mode = #tpu.pipeline_mode<synchronous>, transform_indices = @transform_10, window_bounds = array<i64: 32, 128>}, {pipeline_mode = #tpu.pipeline_mode<synchronous>, transform_indices = @transform_11, window_bounds = array<i64: 1, 128>}, {pipeline_mode = #tpu.pipeline_mode<synchronous>, transform_indices = @transform_12, window_bounds = array<i64: 128, 16>}, {transform_indices = @transform_13, window_bounds = array<i64: 1, 2, 128>}, {pipeline_mode = #tpu.pipeline_mode<synchronous>, transform_indices = @transform_14, window_bounds = array<i64: 6, 2, 1>}]} {
    %c0_i32 = arith.constant 0 : i32
    %0 = arith.cmpi eq, %arg0, %c0_i32 : i32
    %1 = arith.extui %0 : i1 to i32
    %c0_i32_0 = arith.constant 0 : i32
    %2 = arith.cmpi ne, %1, %c0_i32_0 : i32
    scf.if %2 {
      %cst_52 = arith.constant 0.000000e+00 : f32
      %104 = vector.broadcast %cst_52 : f32 to vector<2x32xf32>
      %c0_53 = arith.constant 0 : index
      %c0_54 = arith.constant 0 : index
      %105 = vector.load %arg16[%c0_53, %c0_54] : memref<2x32xf32, #tpu.memory_space<vmem>>, vector<2x32xf32>
      tpu.vector_store %arg16[%c0_53, %c0_54], %104 {strides = array<i32>} : memref<2x32xf32, #tpu.memory_space<vmem>>, vector<2x32xf32>,
      %cst_55 = arith.constant 0.000000e+00 : f32
      %106 = vector.broadcast %cst_55 : f32 to vector<2x32xf32>
      %c0_56 = arith.constant 0 : index
      %c0_57 = arith.constant 0 : index
      %107 = vector.load %arg17[%c0_56, %c0_57] : memref<2x32xf32, #tpu.memory_space<vmem>>, vector<2x32xf32>
      tpu.vector_store %arg17[%c0_56, %c0_57], %106 {strides = array<i32>} : memref<2x32xf32, #tpu.memory_space<vmem>>, vector<2x32xf32>,
    } else {
    }
    %c0 = arith.constant 0 : index
    %c0_1 = arith.constant 0 : index
    %3 = vector.load %arg16[%c0, %c0_1] : memref<2x32xf32, #tpu.memory_space<vmem>>, vector<2x32xf32>
    %4 = arith.truncf %3 : vector<2x32xf32> to vector<2x32xbf16>
    %c0_2 = arith.constant 0 : index
    %c0_3 = arith.constant 0 : index
    %5 = vector.load %arg4[%c0_2, %c0_3] : memref<32x160xbf16, #tpu.memory_space<vmem>>, vector<32x160xbf16>
    %cst = arith.constant dense<0.000000e+00> : vector<2x160xf32>
    %6 = tpu.matmul %4, %5, %cst {dimension_numbers = #tpu.dot_dimension_numbers<[1], [0], [0], [1], [0, 0, 1, 1], [], []>} : vector<2x32xbf16>, vector<32x160xbf16>, vector<2x160xf32> -> vector<2x160xf32>
    %7 = vector.extract_strided_slice %6 {offsets = [0, 0], sizes = [2, 128], strides = [1, 1]} : vector<2x160xf32> to vector<2x128xf32>
    %8 = vector.extract_strided_slice %6 {offsets = [0, 128], sizes = [2, 32], strides = [1, 1]} : vector<2x160xf32> to vector<2x32xf32>
    %c0_4 = arith.constant 0 : index
    %c0_5 = arith.constant 0 : index
    %9 = vector.load %arg5[%c0_4, %c0_5] : memref<1x32xf32, #tpu.memory_space<vmem>>, vector<1x32xf32>
    %10 = vector.broadcast %9 : vector<1x32xf32> to vector<2x32xf32>
    %11 = arith.addf %8, %10 : vector<2x32xf32>
    %c0_6 = arith.constant 0 : index
    %c0_7 = arith.constant 0 : index
    %c0_8 = arith.constant 0 : index
    %12 = vector.load %arg3[%c0_6, %c0_7, %c0_8] : memref<2x8x32xbf16, #tpu.memory_space<vmem>>, vector<2x8x32xbf16>
    %13 = arith.extf %12 : vector<2x8x32xbf16> to vector<2x8x32xf32>
    %14 = vector.shape_cast %11 : vector<2x32xf32> to vector<2x1x32xf32>
    %15 = vector.broadcast %14 : vector<2x1x32xf32> to vector<2x8x32xf32>
    %16 = arith.addf %13, %15 : vector<2x8x32xf32>
    %17 = math.tanh %16 : vector<2x8x32xf32>
    %c0_9 = arith.constant 0 : index
    %c0_10 = arith.constant 0 : index
    %18 = vector.load %arg6[%c0_9, %c0_10] : memref<1x32xf32, #tpu.memory_space<vmem>>, vector<1x32xf32>
    %19 = vector.shape_cast %18 : vector<1x32xf32> to vector<1x1x32xf32>
    %20 = vector.broadcast %19 : vector<1x1x32xf32> to vector<2x8x32xf32>
    %21 = arith.mulf %17, %20 : vector<2x8x32xf32>
    %cst_11 = arith.constant dense<0.000000e+00> : vector<2x8xf32>
    %22 = vector.multi_reduction <add>, %21, %cst_11 [2] : vector<2x8x32xf32> to vector<2x8xf32>
    %c0_12 = arith.constant 0 : index
    %c0_13 = arith.constant 0 : index
    %23 = vector.load %arg7[%c0_12, %c0_13] : memref<1x1xf32, #tpu.memory_space<vmem>>, vector<1x1xf32>
    %24 = vector.broadcast %23 : vector<1x1xf32> to vector<2x8xf32>
    %25 = arith.addf %22, %24 : vector<2x8xf32>
    %cst_14 = arith.constant dense<0xFF800000> : vector<2xf32>
    %26 = vector.multi_reduction <maximumf>, %25, %cst_14 [1] : vector<2x8xf32> to vector<2xf32>
    %27 = vector.shape_cast %26 : vector<2xf32> to vector<2x1xf32>
    %28 = vector.broadcast %27 : vector<2x1xf32> to vector<2x8xf32>
    %29 = arith.subf %25, %28 : vector<2x8xf32>
    %30 = math.exp %29 : vector<2x8xf32>
    %cst_15 = arith.constant dense<0.000000e+00> : vector<2xf32>
    %31 = vector.multi_reduction <add>, %30, %cst_15 [1] : vector<2x8xf32> to vector<2xf32>
    %32 = vector.shape_cast %31 : vector<2xf32> to vector<2x1xf32>
    %33 = tpu.reciprocal %32 {approx = true} : vector<2x1xf32> -> vector<2x1xf32>
    %34 = vector.broadcast %33 : vector<2x1xf32> to vector<2x8xf32>
    %35 = arith.mulf %30, %34 : vector<2x8xf32>
    %36 = vector.shape_cast %35 : vector<2x8xf32> to vector<2x8x1xf32>
    %c0_16 = arith.constant 0 : index
    %c0_17 = arith.constant 0 : index
    %c0_18 = arith.constant 0 : index
    %37 = vector.load %arg2[%c0_16, %c0_17, %c0_18] : memref<2x8x32xbf16, #tpu.memory_space<vmem>>, vector<2x8x32xbf16>
    %38 = arith.extf %37 : vector<2x8x32xbf16> to vector<2x8x32xf32>
    %39 = vector.broadcast %36 : vector<2x8x1xf32> to vector<2x8x32xf32>
    %40 = arith.mulf %39, %38 : vector<2x8x32xf32>
    %cst_19 = arith.constant dense<0.000000e+00> : vector<2x32xf32>
    %41 = vector.multi_reduction <add>, %40, %cst_19 [1] : vector<2x8x32xf32> to vector<2x32xf32>
    %c0_20 = arith.constant 0 : index
    %c0_21 = arith.constant 0 : index
    %c0_22 = arith.constant 0 : index
    %42 = vector.load %arg1[%c0_20, %c0_21, %c0_22] : memref<1x2x16xbf16, #tpu.memory_space<vmem>>, vector<1x2x16xbf16>
    %43 = vector.shape_cast %42 : vector<1x2x16xbf16> to vector<2x16xbf16>
    %44 = arith.truncf %41 : vector<2x32xf32> to vector<2x32xbf16>
    %c0_23 = arith.constant 0 : index
    %c0_24 = arith.constant 0 : index
    %45 = vector.load %arg8[%c0_23, %c0_24] : memref<32x128xbf16, #tpu.memory_space<vmem>>, vector<32x128xbf16>
    %cst_25 = arith.constant dense<0.000000e+00> : vector<2x128xf32>
    %46 = tpu.matmul %44, %45, %cst_25 {dimension_numbers = #tpu.dot_dimension_numbers<[1], [0], [0], [1], [0, 0, 1, 1], [], []>} : vector<2x32xbf16>, vector<32x128xbf16>, vector<2x128xf32> -> vector<2x128xf32>
    %c0_26 = arith.constant 0 : index
    %c0_27 = arith.constant 0 : index
    %47 = vector.load %arg9[%c0_26, %c0_27] : memref<16x128xbf16, #tpu.memory_space<vmem>>, vector<16x128xbf16>
    %cst_28 = arith.constant dense<0.000000e+00> : vector<2x128xf32>
    %48 = tpu.matmul %43, %47, %cst_28 {dimension_numbers = #tpu.dot_dimension_numbers<[1], [0], [0], [1], [0, 0, 1, 1], [], []>} : vector<2x16xbf16>, vector<16x128xbf16>, vector<2x128xf32> -> vector<2x128xf32>
    %49 = arith.addf %46, %48 : vector<2x128xf32>
    %50 = arith.addf %49, %7 : vector<2x128xf32>
    %c0_29 = arith.constant 0 : index
    %c0_30 = arith.constant 0 : index
    %51 = vector.load %arg10[%c0_29, %c0_30] : memref<1x128xf32, #tpu.memory_space<vmem>>, vector<1x128xf32>
    %52 = vector.broadcast %51 : vector<1x128xf32> to vector<2x128xf32>
    %53 = arith.addf %50, %52 : vector<2x128xf32>
    %54 = vector.extract_strided_slice %53 {offsets = [0, 0], sizes = [2, 32], strides = [1, 1]} : vector<2x128xf32> to vector<2x32xf32>
    %55 = arith.negf %54 : vector<2x32xf32>
    %56 = math.exp %55 : vector<2x32xf32>
    %cst_31 = arith.constant 1.000000e+00 : f32
    %57 = vector.broadcast %cst_31 : f32 to vector<2x32xf32>
    %58 = arith.addf %57, %56 : vector<2x32xf32>
    %59 = arith.divf %57, %58 : vector<2x32xf32>
    %60 = vector.extract_strided_slice %53 {offsets = [0, 32], sizes = [2, 32], strides = [1, 1]} : vector<2x128xf32> to vector<2x32xf32>
    %61 = arith.negf %60 : vector<2x32xf32>
    %62 = math.exp %61 : vector<2x32xf32>
    %cst_32 = arith.constant 1.000000e+00 : f32
    %63 = vector.broadcast %cst_32 : f32 to vector<2x32xf32>
    %64 = arith.addf %63, %62 : vector<2x32xf32>
    %65 = arith.divf %63, %64 : vector<2x32xf32>
    %66 = vector.extract_strided_slice %53 {offsets = [0, 64], sizes = [2, 32], strides = [1, 1]} : vector<2x128xf32> to vector<2x32xf32>
    %67 = math.tanh %66 : vector<2x32xf32>
    %68 = vector.extract_strided_slice %53 {offsets = [0, 96], sizes = [2, 32], strides = [1, 1]} : vector<2x128xf32> to vector<2x32xf32>
    %69 = arith.negf %68 : vector<2x32xf32>
    %70 = math.exp %69 : vector<2x32xf32>
    %cst_33 = arith.constant 1.000000e+00 : f32
    %71 = vector.broadcast %cst_33 : f32 to vector<2x32xf32>
    %72 = arith.addf %71, %70 : vector<2x32xf32>
    %73 = arith.divf %71, %72 : vector<2x32xf32>
    %c0_34 = arith.constant 0 : index
    %c0_35 = arith.constant 0 : index
    %74 = vector.load %arg17[%c0_34, %c0_35] : memref<2x32xf32, #tpu.memory_space<vmem>>, vector<2x32xf32>
    %75 = arith.mulf %65, %74 : vector<2x32xf32>
    %76 = arith.mulf %59, %67 : vector<2x32xf32>
    %77 = arith.addf %75, %76 : vector<2x32xf32>
    %78 = math.tanh %77 : vector<2x32xf32>
    %79 = arith.mulf %73, %78 : vector<2x32xf32>
    %c0_36 = arith.constant 0 : index
    %c0_37 = arith.constant 0 : index
    %80 = vector.load %arg17[%c0_36, %c0_37] : memref<2x32xf32, #tpu.memory_space<vmem>>, vector<2x32xf32>
    tpu.vector_store %arg17[%c0_36, %c0_37], %77 {strides = array<i32>} : memref<2x32xf32, #tpu.memory_space<vmem>>, vector<2x32xf32>,
    %c0_38 = arith.constant 0 : index
    %c0_39 = arith.constant 0 : index
    %81 = vector.load %arg16[%c0_38, %c0_39] : memref<2x32xf32, #tpu.memory_space<vmem>>, vector<2x32xf32>
    tpu.vector_store %arg16[%c0_38, %c0_39], %79 {strides = array<i32>} : memref<2x32xf32, #tpu.memory_space<vmem>>, vector<2x32xf32>,
    %82 = arith.truncf %79 : vector<2x32xf32> to vector<2x32xbf16>
    %c0_40 = arith.constant 0 : index
    %c0_41 = arith.constant 0 : index
    %83 = vector.load %arg11[%c0_40, %c0_41] : memref<32x128xbf16, #tpu.memory_space<vmem>>, vector<32x128xbf16>
    %cst_42 = arith.constant dense<0.000000e+00> : vector<2x128xf32>
    %84 = tpu.matmul %82, %83, %cst_42 {dimension_numbers = #tpu.dot_dimension_numbers<[1], [0], [0], [1], [0, 0, 1, 1], [], []>} : vector<2x32xbf16>, vector<32x128xbf16>, vector<2x128xf32> -> vector<2x128xf32>
    %c0_43 = arith.constant 0 : index
    %c0_44 = arith.constant 0 : index
    %85 = vector.load %arg12[%c0_43, %c0_44] : memref<1x128xf32, #tpu.memory_space<vmem>>, vector<1x128xf32>
    %86 = vector.broadcast %85 : vector<1x128xf32> to vector<2x128xf32>
    %87 = arith.addf %84, %86 : vector<2x128xf32>
    %c0_45 = arith.constant 0 : index
    %c0_46 = arith.constant 0 : index
    %c0_47 = arith.constant 0 : index
    %88 = vector.load %arg14[%c0_45, %c0_46, %c0_47] : memref<1x2x128xf32, #tpu.memory_space<vmem>>, vector<1x2x128xf32>
    %89 = vector.shape_cast %88 : vector<1x2x128xf32> to vector<2x128xf32>
    %90 = vector.shape_cast %87 : vector<2x128xf32> to vector<1x2x128xf32>
    tpu.vector_store %arg14[%c0_45, %c0_46, %c0_47], %90 {strides = array<i32>} : memref<1x2x128xf32, #tpu.memory_space<vmem>>, vector<1x2x128xf32>,
    %91 = tpu.iota {dimensions = array<i32: 1>} : vector<2x128xi32>
    %cst_48 = arith.constant dense<0xFF800000> : vector<2xf32>
    %92 = vector.multi_reduction <maximumf>, %87, %cst_48 [1] : vector<2x128xf32> to vector<2xf32>
    %93 = vector.shape_cast %92 : vector<2xf32> to vector<2x1xf32>
    %94 = vector.broadcast %93 : vector<2x1xf32> to vector<2x128xf32>
    %95 = arith.cmpf oeq, %87, %94 : vector<2x128xf32>
    %c128_i32 = arith.constant 128 : i32
    %96 = vector.broadcast %c128_i32 : i32 to vector<2x128xi32>
    %97 = arith.select %95, %91, %96 : vector<2x128xi1>, vector<2x128xi32>
    %cst_49 = arith.constant dense<2147483647> : vector<2xi32>
    %98 = vector.multi_reduction <minsi>, %97, %cst_49 [1] : vector<2x128xi32> to vector<2xi32>
    %99 = vector.shape_cast %98 : vector<2xi32> to vector<2x1xi32>
    %100 = arith.index_cast %arg0 : i32 to index
    %c0_50 = arith.constant 0 : index
    %c0_51 = arith.constant 0 : index
    %101 = vector.load %arg15[%100, %c0_50, %c0_51] : memref<6x2x1xi32, #tpu.memory_space<vmem>>, vector<1x2x1xi32>
    %102 = vector.shape_cast %101 : vector<1x2x1xi32> to vector<2x1xi32>
    %103 = vector.shape_cast %99 : vector<2x1xi32> to vector<1x2x1xi32>
    tpu.vector_store %arg15[%100, %c0_50, %c0_51], %103 {strides = array<i32>} : memref<6x2x1xi32, #tpu.memory_space<vmem>>, vector<1x2x1xi32>,
    return
  }
  func.func @transform_0(%arg0: i32) -> (i32, i32, i32) {
    %c0_i32 = arith.constant 0 : i32
    %c0_i32_0 = arith.constant 0 : i32
    %c0_i32_1 = arith.constant 0 : i32
    return %arg0, %c0_i32, %c0_i32_0 : i32, i32, i32
  }
  func.func @transform_1(%arg0: i32) -> (i32, i32, i32) {
    %c0_i32 = arith.constant 0 : i32
    %c0_i32_0 = arith.constant 0 : i32
    %c0_i32_1 = arith.constant 0 : i32
    %c0_i32_2 = arith.constant 0 : i32
    return %c0_i32, %c0_i32_0, %c0_i32_1 : i32, i32, i32
  }
  func.func @transform_2(%arg0: i32) -> (i32, i32, i32) {
    %c0_i32 = arith.constant 0 : i32
    %c0_i32_0 = arith.constant 0 : i32
    %c0_i32_1 = arith.constant 0 : i32
    %c0_i32_2 = arith.constant 0 : i32
    return %c0_i32, %c0_i32_0, %c0_i32_1 : i32, i32, i32
  }
  func.func @transform_3(%arg0: i32) -> (i32, i32) {
    %c0_i32 = arith.constant 0 : i32
    %c0_i32_0 = arith.constant 0 : i32
    %c0_i32_1 = arith.constant 0 : i32
    return %c0_i32, %c0_i32_0 : i32, i32
  }
  func.func @transform_4(%arg0: i32) -> (i32, i32) {
    %c0_i32 = arith.constant 0 : i32
    %c0_i32_0 = arith.constant 0 : i32
    %c0_i32_1 = arith.constant 0 : i32
    return %c0_i32, %c0_i32_0 : i32, i32
  }
  func.func @transform_5(%arg0: i32) -> (i32, i32) {
    %c0_i32 = arith.constant 0 : i32
    %c0_i32_0 = arith.constant 0 : i32
    %c0_i32_1 = arith.constant 0 : i32
    return %c0_i32, %c0_i32_0 : i32, i32
  }
  func.func @transform_6(%arg0: i32) -> (i32, i32) {
    %c0_i32 = arith.constant 0 : i32
    %c0_i32_0 = arith.constant 0 : i32
    %c0_i32_1 = arith.constant 0 : i32
    return %c0_i32, %c0_i32_0 : i32, i32
  }
  func.func @transform_7(%arg0: i32) -> (i32, i32) {
    %c0_i32 = arith.constant 0 : i32
    %c0_i32_0 = arith.constant 0 : i32
    %c0_i32_1 = arith.constant 0 : i32
    return %c0_i32, %c0_i32_0 : i32, i32
  }
  func.func @transform_8(%arg0: i32) -> (i32, i32) {
    %c0_i32 = arith.constant 0 : i32
    %c0_i32_0 = arith.constant 0 : i32
    %c0_i32_1 = arith.constant 0 : i32
    return %c0_i32, %c0_i32_0 : i32, i32
  }
  func.func @transform_9(%arg0: i32) -> (i32, i32) {
    %c0_i32 = arith.constant 0 : i32
    %c0_i32_0 = arith.constant 0 : i32
    %c0_i32_1 = arith.constant 0 : i32
    return %c0_i32, %c0_i32_0 : i32, i32
  }
  func.func @transform_10(%arg0: i32) -> (i32, i32) {
    %c0_i32 = arith.constant 0 : i32
    %c0_i32_0 = arith.constant 0 : i32
    %c0_i32_1 = arith.constant 0 : i32
    return %c0_i32, %c0_i32_0 : i32, i32
  }
  func.func @transform_11(%arg0: i32) -> (i32, i32) {
    %c0_i32 = arith.constant 0 : i32
    %c0_i32_0 = arith.constant 0 : i32
    %c0_i32_1 = arith.constant 0 : i32
    return %c0_i32, %c0_i32_0 : i32, i32
  }
  func.func @transform_12(%arg0: i32) -> (i32, i32) {
    %c0_i32 = arith.constant 0 : i32
    %c0_i32_0 = arith.constant 0 : i32
    %c0_i32_1 = arith.constant 0 : i32
    return %c0_i32, %c0_i32_0 : i32, i32
  }
  func.func @transform_13(%arg0: i32) -> (i32, i32, i32) {
    %c0_i32 = arith.constant 0 : i32
    %c0_i32_0 = arith.constant 0 : i32
    %c0_i32_1 = arith.constant 0 : i32
    return %arg0, %c0_i32, %c0_i32_0 : i32, i32, i32
  }
  func.func @transform_14(%arg0: i32) -> (i32, i32, i32) {
    %c0_i32 = arith.constant 0 : i32
    %c0_i32_0 = arith.constant 0 : i32
    %c0_i32_1 = arith.constant 0 : i32
    %c0_i32_2 = arith.constant 0 : i32
    return %c0_i32, %c0_i32_0, %c0_i32_1 : i32, i32, i32
  }
}

</mosaic_0001>

<llo_original>
// kernel: tpu_custom_call.1
$region0: #{tpu_custom_call.1}
  #allocation0 [shape = 'u32[]', space=smem, size = 0x4, offset = 0x4, fixed_abs, tag = 'smem constant byte address 0x4 - core index']
  #allocation1 [shape = 'u32[144,128]{1,0:T(1,128)}', space=vmem, size = 0x12000, scoped, tag = 'internal scratch']
  #allocation2 [shape = 'f32[2,32]{1,0:T(2,128)}', space=vmem, size = 0x400, scoped, tag = 'scratch operand']
  #allocation3 [shape = 'f32[2,32]{1,0:T(2,128)}', space=vmem, size = 0x400, scoped, tag = 'scratch operand']
  #allocation4 [shape = 'bf16[2,16]{1,0:T(2,128)(2,1)}', space=vmem, size = 0x200, scoped, tag = 'scratch operand']
  #allocation5 [shape = 's32[2,1]{1,0:T(2,128)}', space=vmem, size = 0x400, scoped, tag = 'scratch operand']
  #allocation6 [shape = 'f32[1,1]{1,0:T(1,128)S(1)}', space=vmem, size = 0x200, scoped, tag = 'scoped memory for tpu_custom_call.1']
  %s0 = inlined_call_operand.hbm [shape: bf16[6,2,16], index: 0, kind: input, shape index: {}]
  %s1 = inlined_call_operand.vmem [shape: bf16[2,8,32], index: 1, kind: input, shape index: {}]
  %s2 = inlined_call_operand.hbm [shape: bf16[2,8,32], index: 2, kind: input, shape index: {}]
  %s3 = inlined_call_operand.vmem [shape: bf16[32,160], index: 3, kind: input, shape index: {}]
  %s4 = inlined_call_operand.vmem [shape: f32[1,32], index: 4, kind: input, shape index: {}]
  %s5 = inlined_call_operand.vmem [shape: f32[1,32], index: 5, kind: input, shape index: {}]
  %s6 = inlined_call_operand.<no memory space> [shape: f32[1,1], index: 6, kind: input, shape index: {}]
  %s7 = inlined_call_operand.vmem [shape: bf16[32,128], index: 7, kind: input, shape index: {}]
  %s8 = inlined_call_operand.vmem [shape: bf16[16,128], index: 8, kind: input, shape index: {}]
  %s9 = inlined_call_operand.vmem [shape: f32[1,128], index: 9, kind: input, shape index: {}]
  %s10 = inlined_call_operand.vmem [shape: bf16[32,128], index: 10, kind: input, shape index: {}]
  %s11 = inlined_call_operand.vmem [shape: f32[1,128], index: 11, kind: input, shape index: {}]
  %s12 = inlined_call_operand.vmem [shape: bf16[128,16], index: 12, kind: input, shape index: {}]
  %s13 = inlined_call_operand.hbm [shape: f32[6,2,128], index: 13, kind: output, shape index: {0}]
  %s14 = inlined_call_operand.vmem [shape: s32[6,2,1], index: 14, kind: output, shape index: {1}]
  %15 = xla_tuple %s13, %s14
  %s16 = sld [smem:[#allocation0]]
  $region105: #{tpu_custom_call.1} parent=0
    _
  %s18 = ssub.s32 1, %s16
  %s19 = scalar_select 0, %s18, %s16
  %v20 = vstv %s6
  %21 = vst [vmem:[#allocation6] sm:$0x1] %v20
  $region1: #{tpu_custom_call.1} parent=0
    #allocation7 [shape = 'u8[1024]{0}', space=vmem, size = 0x400, scoped, tag = 'input window, operand 0']
    #allocation8 [shape = 's32[2]{0}', space=sflag, size = 0x8, scoped, tag = 'scoped memory for tpu_custom_call.1']
    #allocation9 [shape = 's32[2]{0}', space=sflag, size = 0x8, scoped, tag = 'scoped memory for tpu_custom_call.1']
    #allocation10 [shape = 'u8[4096]{0}', space=vmem, size = 0x1000, scoped, tag = 'input window, operand 2, single buffered']
    #allocation11 [shape = 's32[1]{0}', space=sflag, size = 0x4, scoped, tag = 'scoped memory for tpu_custom_call.1']
    #allocation12 [shape = 'u8[2048]{0}', space=vmem, size = 0x800, scoped, tag = 'output window, operand 0']
    %22 = vsyncpa [#allocation8], 0
    %s23 = scalar_lea.sflag [#allocation8], 1
    %24 = vsyncpa %s23, 0
    %25 = vsyncpa [#allocation11], 0
    %26 = vsyncpa [#allocation9], 0
    %s27 = scalar_lea.sflag [#allocation9], 1
    %28 = vsyncpa %s27, 0
    loop: start=0, step=1, limit=8
    $region2: #{tpu_custom_call.1} parent=1 // loop_pre_header
      _
    $region3: #{tpu_custom_call.1} parent=1 // loop_header
      %s30 = sphi 0, %s34
      %p31 = scmp.ge.s32.totalorder %s30, 8
      %s40 = sphi 0, %s42
      %s43 = sphi 0, %s40
      %s44 = sphi 0, %s43
      %s60 = sphi 0, %s44
      %s64 = sphi 0, %s64
      %s66 = sphi 0, %s64
      %s67 = sphi 0, %s66
      %s81 = sphi 0, %s67
      %s85 = sphi 0, %s85
      %s87 = sphi 0, %s85
      %s88 = sphi 0, %s87
      %s102 = sphi 0, %s88
      %s106 = sphi 0, %s106
      %s108 = sphi 0, %s106
      %s109 = sphi 0, %s108
      %s123 = sphi 0, %s109
      %s127 = sphi 0, %s127
      %s129 = sphi 0, %s127
      %s130 = sphi 0, %s129
      %s144 = sphi 0, %s130
      %s148 = sphi 0, %s148
      %s150 = sphi 0, %s148
      %s151 = sphi 0, %s150
      %s165 = sphi 0, %s151
      %s169 = sphi 0, %s169
      %s171 = sphi 0, %s169
      %s172 = sphi 0, %s171
      %s186 = sphi 0, %s172
      %s190 = sphi 0, %s190
      %s192 = sphi 0, %s190
      %s193 = sphi 0, %s192
      %s207 = sphi 0, %s193
      %s211 = sphi 0, %s211
      %s213 = sphi 0, %s211
      %s214 = sphi 0, %s213
      %s228 = sphi 0, %s214
      %s232 = sphi 0, %s232
      %s234 = sphi 0, %s232
      %s235 = sphi 0, %s234
      %s249 = sphi 0, %s235
      %s253 = sphi 0, %s253
      %s255 = sphi 0, %s253
      %s256 = sphi 0, %s255
      %s270 = sphi 0, %s256
      %s274 = sphi 0, %s274
      %s276 = sphi 0, %s274
      %s277 = sphi 0, %s276
      %s291 = sphi 0, %s277
      %s295 = sphi 0, %s295
      %s297 = sphi 0, %s295
      %s298 = sphi 0, %s297
      %s312 = sphi 0, %s298
      %s318 = sphi 0, %s320
      %s321 = sphi 0, %s318
      %s322 = sphi 0, %s321
      %s338 = sphi 0, %s322
      %s342 = sphi 0, %s342
      %s344 = sphi 0, %s342
      %s345 = sphi 0, %s344
      %s359 = sphi 0, %s345
    $region4: #{tpu_custom_call.1} parent=1 // loop_header_branch
      %33 = sbr.rel (%p31) target = $region8
    $region5: #{tpu_custom_call.1} parent=1 // loop_body
      %s35 = ssub.s32 %s30, 1
      %s36 = ssub.s32 %s30, 2
      %s37 = sadd.s32 %s30, 1
      %s38 = ssub.s32 %s30, %s37
      %p39 = scmp.eq.s32.totalorder %s38, 0
      %s41 = sadd.s32 %s40, 1
      %s42 = scalar_select %p39, %s40, %s41
      %p45 = pneg %p39
      %p46 = scmp.eq.s32.totalorder %s30, 5
      %p47 = por %p45, %p46
      %p48 = scmp.ne.s32.totalorder %s40, %s43
      %p49 = scmp.eq.s32.totalorder %s30, 0
      %p50 = por %p48, %p49
      %p51 = scmp.ne.s32.totalorder %s40, %s43
      %p52 = scmp.eq.s32.totalorder %s35, 5
      %p53 = por %p51, %p52
      %p54 = scmp.ne.s32.totalorder %s43, %s44
      %p55 = scmp.eq.s32.totalorder %s35, 0
      %p56 = por %p54, %p55
      %p57 = scmp.ne.s32.totalorder %s43, %s44
      %p58 = scmp.eq.s32.totalorder %s36, 5
      %p59 = por %p57, %p58
      %p61 = scmp.ne.s32.totalorder %s44, %s60
      %p62 = scmp.eq.s32.totalorder %s36, 0
      %p63 = por %p61, %p62
      %s65 = sadd.s32 %s64, 1
      %p68 = scmp.eq.s32.totalorder %s30, 5
      %p69 = scmp.ne.s32.totalorder %s64, %s66
      %p70 = scmp.eq.s32.totalorder %s30, 0
      %p71 = por %p69, %p70
      %p72 = scmp.ne.s32.totalorder %s64, %s66
      %p73 = scmp.eq.s32.totalorder %s35, 5
      %p74 = por %p72, %p73
      %p75 = scmp.ne.s32.totalorder %s66, %s67
      %p76 = scmp.eq.s32.totalorder %s35, 0
      %p77 = por %p75, %p76
      %p78 = scmp.ne.s32.totalorder %s66, %s67
      %p79 = scmp.eq.s32.totalorder %s36, 5
      %p80 = por %p78, %p79
      %p82 = scmp.ne.s32.totalorder %s67, %s81
      %p83 = scmp.eq.s32.totalorder %s36, 0
      %p84 = por %p82, %p83
      %s86 = sadd.s32 %s85, 1
      %p89 = scmp.eq.s32.totalorder %s30, 5
      %p90 = scmp.ne.s32.totalorder %s85, %s87
      %p91 = scmp.eq.s32.totalorder %s30, 0
      %p92 = por %p90, %p91
      %p93 = scmp.ne.s32.totalorder %s85, %s87
      %p94 = scmp.eq.s32.totalorder %s35, 5
      %p95 = por %p93, %p94
      %p96 = scmp.ne.s32.totalorder %s87, %s88
      %p97 = scmp.eq.s32.totalorder %s35, 0
      %p98 = por %p96, %p97
      %p99 = scmp.ne.s32.totalorder %s87, %s88
      %p100 = scmp.eq.s32.totalorder %s36, 5
      %p101 = por %p99, %p100
      %p103 = scmp.ne.s32.totalorder %s88, %s102
      %p104 = scmp.eq.s32.totalorder %s36, 0
      %p105 = por %p103, %p104
      %s107 = sadd.s32 %s106, 1
      %p110 = scmp.eq.s32.totalorder %s30, 5
      %p111 = scmp.ne.s32.totalorder %s106, %s108
      %p112 = scmp.eq.s32.totalorder %s30, 0
      %p113 = por %p111, %p112
      %p114 = scmp.ne.s32.totalorder %s106, %s108
      %p115 = scmp.eq.s32.totalorder %s35, 5
      %p116 = por %p114, %p115
      %p117 = scmp.ne.s32.totalorder %s108, %s109
      %p118 = scmp.eq.s32.totalorder %s35, 0
      %p119 = por %p117, %p118
      %p120 = scmp.ne.s32.totalorder %s108, %s109
      %p121 = scmp.eq.s32.totalorder %s36, 5
      %p122 = por %p120, %p121
      %p124 = scmp.ne.s32.totalorder %s109, %s123
      %p125 = scmp.eq.s32.totalorder %s36, 0
      %p126 = por %p124, %p125
      %s128 = sadd.s32 %s127, 1
      %p131 = scmp.eq.s32.totalorder %s30, 5
      %p132 = scmp.ne.s32.totalorder %s127, %s129
      %p133 = scmp.eq.s32.totalorder %s30, 0
      %p134 = por %p132, %p133
      %p135 = scmp.ne.s32.totalorder %s127, %s129
      %p136 = scmp.eq.s32.totalorder %s35, 5
      %p137 = por %p135, %p136
      %p138 = scmp.ne.s32.totalorder %s129, %s130
      %p139 = scmp.eq.s32.totalorder %s35, 0
      %p140 = por %p138, %p139
      %p141 = scmp.ne.s32.totalorder %s129, %s130
      %p142 = scmp.eq.s32.totalorder %s36, 5
      %p143 = por %p141, %p142
      %p145 = scmp.ne.s32.totalorder %s130, %s144
      %p146 = scmp.eq.s32.totalorder %s36, 0
      %p147 = por %p145, %p146
      %s149 = sadd.s32 %s148, 1
      %p152 = scmp.eq.s32.totalorder %s30, 5
      %p153 = scmp.ne.s32.totalorder %s148, %s150
      %p154 = scmp.eq.s32.totalorder %s30, 0
      %p155 = por %p153, %p154
      %p156 = scmp.ne.s32.totalorder %s148, %s150
      %p157 = scmp.eq.s32.totalorder %s35, 5
      %p158 = por %p156, %p157
      %p159 = scmp.ne.s32.totalorder %s150, %s151
      %p160 = scmp.eq.s32.totalorder %s35, 0
      %p161 = por %p159, %p160
      %p162 = scmp.ne.s32.totalorder %s150, %s151
      %p163 = scmp.eq.s32.totalorder %s36, 5
      %p164 = por %p162, %p163
      %p166 = scmp.ne.s32.totalorder %s151, %s165
      %p167 = scmp.eq.s32.totalorder %s36, 0
      %p168 = por %p166, %p167
      %s170 = sadd.s32 %s169, 1
      %p173 = scmp.eq.s32.totalorder %s30, 5
      %p174 = scmp.ne.s32.totalorder %s169, %s171
      %p175 = scmp.eq.s32.totalorder %s30, 0
      %p176 = por %p174, %p175
      %p177 = scmp.ne.s32.totalorder %s169, %s171
      %p178 = scmp.eq.s32.totalorder %s35, 5
      %p179 = por %p177, %p178
      %p180 = scmp.ne.s32.totalorder %s171, %s172
      %p181 = scmp.eq.s32.totalorder %s35, 0
      %p182 = por %p180, %p181
      %p183 = scmp.ne.s32.totalorder %s171, %s172
      %p184 = scmp.eq.s32.totalorder %s36, 5
      %p185 = por %p183, %p184
      %p187 = scmp.ne.s32.totalorder %s172, %s186
      %p188 = scmp.eq.s32.totalorder %s36, 0
      %p189 = por %p187, %p188
      %s191 = sadd.s32 %s190, 1
      %p194 = scmp.eq.s32.totalorder %s30, 5
      %p195 = scmp.ne.s32.totalorder %s190, %s192
      %p196 = scmp.eq.s32.totalorder %s30, 0
      %p197 = por %p195, %p196
      %p198 = scmp.ne.s32.totalorder %s190, %s192
      %p199 = scmp.eq.s32.totalorder %s35, 5
      %p200 = por %p198, %p199
      %p201 = scmp.ne.s32.totalorder %s192, %s193
      %p202 = scmp.eq.s32.totalorder %s35, 0
      %p203 = por %p201, %p202
      %p204 = scmp.ne.s32.totalorder %s192, %s193
      %p205 = scmp.eq.s32.totalorder %s36, 5
      %p206 = por %p204, %p205
      %p208 = scmp.ne.s32.totalorder %s193, %s207
      %p209 = scmp.eq.s32.totalorder %s36, 0
      %p210 = por %p208, %p209
      %s212 = sadd.s32 %s211, 1
      %p215 = scmp.eq.s32.totalorder %s30, 5
      %p216 = scmp.ne.s32.totalorder %s211, %s213
      %p217 = scmp.eq.s32.totalorder %s30, 0
      %p218 = por %p216, %p217
      %p219 = scmp.ne.s32.totalorder %s211, %s213
      %p220 = scmp.eq.s32.totalorder %s35, 5
      %p221 = por %p219, %p220
      %p222 = scmp.ne.s32.totalorder %s213, %s214
      %p223 = scmp.eq.s32.totalorder %s35, 0
      %p224 = por %p222, %p223
      %p225 = scmp.ne.s32.totalorder %s213, %s214
      %p226 = scmp.eq.s32.totalorder %s36, 5
      %p227 = por %p225, %p226
      %p229 = scmp.ne.s32.totalorder %s214, %s228
      %p230 = scmp.eq.s32.totalorder %s36, 0
      %p231 = por %p229, %p230
      %s233 = sadd.s32 %s232, 1
      %p236 = scmp.eq.s32.totalorder %s30, 5
      %p237 = scmp.ne.s32.totalorder %s232, %s234
      %p238 = scmp.eq.s32.totalorder %s30, 0
      %p239 = por %p237, %p238
      %p240 = scmp.ne.s32.totalorder %s232, %s234
      %p241 = scmp.eq.s32.totalorder %s35, 5
      %p242 = por %p240, %p241
      %p243 = scmp.ne.s32.totalorder %s234, %s235
      %p244 = scmp.eq.s32.totalorder %s35, 0
      %p245 = por %p243, %p244
      %p246 = scmp.ne.s32.totalorder %s234, %s235
      %p247 = scmp.eq.s32.totalorder %s36, 5
      %p248 = por %p246, %p247
      %p250 = scmp.ne.s32.totalorder %s235, %s249
      %p251 = scmp.eq.s32.totalorder %s36, 0
      %p252 = por %p250, %p251
      %s254 = sadd.s32 %s253, 1
      %p257 = scmp.eq.s32.totalorder %s30, 5
      %p258 = scmp.ne.s32.totalorder %s253, %s255
      %p259 = scmp.eq.s32.totalorder %s30, 0
      %p260 = por %p258, %p259
      %p261 = scmp.ne.s32.totalorder %s253, %s255
      %p262 = scmp.eq.s32.totalorder %s35, 5
      %p263 = por %p261, %p262
      %p264 = scmp.ne.s32.totalorder %s255, %s256
      %p265 = scmp.eq.s32.totalorder %s35, 0
      %p266 = por %p264, %p265
      %p267 = scmp.ne.s32.totalorder %s255, %s256
      %p268 = scmp.eq.s32.totalorder %s36, 5
      %p269 = por %p267, %p268
      %p271 = scmp.ne.s32.totalorder %s256, %s270
      %p272 = scmp.eq.s32.totalorder %s36, 0
      %p273 = por %p271, %p272
      %s275 = sadd.s32 %s274, 1
      %p278 = scmp.eq.s32.totalorder %s30, 5
      %p279 = scmp.ne.s32.totalorder %s274, %s276
      %p280 = scmp.eq.s32.totalorder %s30, 0
      %p281 = por %p279, %p280
      %p282 = scmp.ne.s32.totalorder %s274, %s276
      %p283 = scmp.eq.s32.totalorder %s35, 5
      %p284 = por %p282, %p283
      %p285 = scmp.ne.s32.totalorder %s276, %s277
      %p286 = scmp.eq.s32.totalorder %s35, 0
      %p287 = por %p285, %p286
      %p288 = scmp.ne.s32.totalorder %s276, %s277
      %p289 = scmp.eq.s32.totalorder %s36, 5
      %p290 = por %p288, %p289
      %p292 = scmp.ne.s32.totalorder %s277, %s291
      %p293 = scmp.eq.s32.totalorder %s36, 0
      %p294 = por %p292, %p293
      %s296 = sadd.s32 %s295, 1
      %p299 = scmp.eq.s32.totalorder %s30, 5
      %p300 = scmp.ne.s32.totalorder %s295, %s297
      %p301 = scmp.eq.s32.totalorder %s30, 0
      %p302 = por %p300, %p301
      %p303 = scmp.ne.s32.totalorder %s295, %s297
      %p304 = scmp.eq.s32.totalorder %s35, 5
      %p305 = por %p303, %p304
      %p306 = scmp.ne.s32.totalorder %s297, %s298
      %p307 = scmp.eq.s32.totalorder %s35, 0
      %p308 = por %p306, %p307
      %p309 = scmp.ne.s32.totalorder %s297, %s298
      %p310 = scmp.eq.s32.totalorder %s36, 5
      %p311 = por %p309, %p310
      %p313 = scmp.ne.s32.totalorder %s298, %s312
      %p314 = scmp.eq.s32.totalorder %s36, 0
      %p315 = por %p313, %p314
      %s316 = ssub.s32 %s30, %s37
      %p317 = scmp.eq.s32.totalorder %s316, 0
      %s319 = sadd.s32 %s318, 1
      %s320 = scalar_select %p317, %s318, %s319
      %p323 = pneg %p317
      %p324 = scmp.eq.s32.totalorder %s30, 5
      %p325 = por %p323, %p324
      %p326 = scmp.ne.s32.totalorder %s318, %s321
      %p327 = scmp.eq.s32.totalorder %s30, 0
      %p328 = por %p326, %p327
      %p329 = scmp.ne.s32.totalorder %s318, %s321
      %p330 = scmp.eq.s32.totalorder %s35, 5
      %p331 = por %p329, %p330
      %p332 = scmp.ne.s32.totalorder %s321, %s322
      %p333 = scmp.eq.s32.totalorder %s35, 0
      %p334 = por %p332, %p333
      %p335 = scmp.ne.s32.totalorder %s321, %s322
      %p336 = scmp.eq.s32.totalorder %s36, 5
      %p337 = por %p335, %p336
      %p339 = scmp.ne.s32.totalorder %s322, %s338
      %p340 = scmp.eq.s32.totalorder %s36, 0
      %p341 = por %p339, %p340
      %s343 = sadd.s32 %s342, 1
      %p346 = scmp.eq.s32.totalorder %s30, 5
      %p347 = scmp.ne.s32.totalorder %s342, %s344
      %p348 = scmp.eq.s32.totalorder %s30, 0
      %p349 = por %p347, %p348
      %p350 = scmp.ne.s32.totalorder %s342, %s344
      %p351 = scmp.eq.s32.totalorder %s35, 5
      %p352 = por %p350, %p351
      %p353 = scmp.ne.s32.totalorder %s344, %s345
      %p354 = scmp.eq.s32.totalorder %s35, 0
      %p355 = por %p353, %p354
      %p356 = scmp.ne.s32.totalorder %s344, %s345
      %p357 = scmp.eq.s32.totalorder %s36, 5
      %p358 = por %p356, %p357
      %p360 = scmp.ne.s32.totalorder %s345, %s359
      %p361 = scmp.eq.s32.totalorder %s36, 0
      %p362 = por %p360, %p361
      %p363 = scmp.le.s32.totalorder 1, %s30
      %p364 = scmp.lt.s32.totalorder %s30, 7
      %p365 = pnand %p363, %p364
      %p366 = pneg %p365
      // Predicated region
      $region9: #{tpu_custom_call.1} parent=5 // pred_check
        _
      $region10: #{tpu_custom_call.1} parent=5 // pred_check_branch
        %368 = sbr.rel (%p365) target = $region12
      $region11: #{tpu_custom_call.1} parent=5 // pred_region
        %s369 = ssub.s32 %s30, 1
        // Predicated region
        $region13: #{tpu_custom_call.1} parent=11 // pred_check
          %p370 = pneg %p77
        $region14: #{tpu_custom_call.1} parent=11 // pred_check_branch
          %372 = sbr.rel (%p370) target = $region16
        $region15: #{tpu_custom_call.1} parent=11 // pred_region
          _
        $region16: #{tpu_custom_call.1} parent=11 // pred_fallthru
          _
        // Predicated region
        $region17: #{tpu_custom_call.1} parent=11 // pred_check
          %p373 = pneg %p98
        $region18: #{tpu_custom_call.1} parent=11 // pred_check_branch
          %375 = sbr.rel (%p373) target = $region20
        $region19: #{tpu_custom_call.1} parent=11 // pred_region
          %s377 = ssub.s32 128, 128
          %378 = vsyncadd [#allocation11], %s377
          %s379 = sshll.u32 [#allocation10], 4
          %s380 = int_to_ptr.vmem [resolvable:$true] %s379
          %385 = dma.hbm_to_vmem [thread:$0]  %s2, 128, %s380, [#allocation11], 64, 64, 4
        $region20: #{tpu_custom_call.1} parent=11 // pred_fallthru
          _
        // Predicated region
        $region21: #{tpu_custom_call.1} parent=11 // pred_check
          %p386 = pneg %p119
        $region22: #{tpu_custom_call.1} parent=11 // pred_check_branch
          %388 = sbr.rel (%p386) target = $region24
        $region23: #{tpu_custom_call.1} parent=11 // pred_region
          _
        $region24: #{tpu_custom_call.1} parent=11 // pred_fallthru
          _
        // Predicated region
        $region25: #{tpu_custom_call.1} parent=11 // pred_check
          %p389 = pneg %p140
        $region26: #{tpu_custom_call.1} parent=11 // pred_check_branch
          %391 = sbr.rel (%p389) target = $region28
        $region27: #{tpu_custom_call.1} parent=11 // pred_region
          _
        $region28: #{tpu_custom_call.1} parent=11 // pred_fallthru
          _
        // Predicated region
        $region29: #{tpu_custom_call.1} parent=11 // pred_check
          %p392 = pneg %p161
        $region30: #{tpu_custom_call.1} parent=11 // pred_check_branch
          %394 = sbr.rel (%p392) target = $region32
        $region31: #{tpu_custom_call.1} parent=11 // pred_region
          _
        $region32: #{tpu_custom_call.1} parent=11 // pred_fallthru
          _
        // Predicated region
        $region33: #{tpu_custom_call.1} parent=11 // pred_check
          %p395 = pneg %p182
        $region34: #{tpu_custom_call.1} parent=11 // pred_check_branch
          %397 = sbr.rel (%p395) target = $region36
        $region35: #{tpu_custom_call.1} parent=11 // pred_region
          _
        $region36: #{tpu_custom_call.1} parent=11 // pred_fallthru
          _
        // Predicated region
        $region37: #{tpu_custom_call.1} parent=11 // pred_check
          %p398 = pneg %p203
        $region38: #{tpu_custom_call.1} parent=11 // pred_check_branch
          %400 = sbr.rel (%p398) target = $region40
        $region39: #{tpu_custom_call.1} parent=11 // pred_region
          _
        $region40: #{tpu_custom_call.1} parent=11 // pred_fallthru
          _
        // Predicated region
        $region41: #{tpu_custom_call.1} parent=11 // pred_check
          %p401 = pneg %p224
        $region42: #{tpu_custom_call.1} parent=11 // pred_check_branch
          %403 = sbr.rel (%p401) target = $region44
        $region43: #{tpu_custom_call.1} parent=11 // pred_region
          _
        $region44: #{tpu_custom_call.1} parent=11 // pred_fallthru
          _
        // Predicated region
        $region45: #{tpu_custom_call.1} parent=11 // pred_check
          %p404 = pneg %p245
        $region46: #{tpu_custom_call.1} parent=11 // pred_check_branch
          %406 = sbr.rel (%p404) target = $region48
        $region47: #{tpu_custom_call.1} parent=11 // pred_region
          _
        $region48: #{tpu_custom_call.1} parent=11 // pred_fallthru
          _
        // Predicated region
        $region49: #{tpu_custom_call.1} parent=11 // pred_check
          %p407 = pneg %p266
        $region50: #{tpu_custom_call.1} parent=11 // pred_check_branch
          %409 = sbr.rel (%p407) target = $region52
        $region51: #{tpu_custom_call.1} parent=11 // pred_region
          _
        $region52: #{tpu_custom_call.1} parent=11 // pred_fallthru
          _
        // Predicated region
        $region53: #{tpu_custom_call.1} parent=11 // pred_check
          %p410 = pneg %p287
        $region54: #{tpu_custom_call.1} parent=11 // pred_check_branch
          %412 = sbr.rel (%p410) target = $region56
        $region55: #{tpu_custom_call.1} parent=11 // pred_region
          _
        $region56: #{tpu_custom_call.1} parent=11 // pred_fallthru
          _
        // Predicated region
        $region57: #{tpu_custom_call.1} parent=11 // pred_check
          %p413 = pneg %p308
        $region58: #{tpu_custom_call.1} parent=11 // pred_check_branch
          %415 = sbr.rel (%p413) target = $region60
        $region59: #{tpu_custom_call.1} parent=11 // pred_region
          _
        $region60: #{tpu_custom_call.1} parent=11 // pred_fallthru
          _
      $region12: #{tpu_custom_call.1} parent=5 // pred_fallthru
        _
      %p416 = scmp.lt.s32.totalorder %s30, 6
      // Predicated region
      $region61: #{tpu_custom_call.1} parent=5 // pred_check
        %p417 = pneg %p416
      $region62: #{tpu_custom_call.1} parent=5 // pred_check_branch
        %419 = sbr.rel (%p417) target = $region64
      $region63: #{tpu_custom_call.1} parent=5 // pred_region
        // Predicated region
        $region65: #{tpu_custom_call.1} parent=63 // pred_check
          %p420 = pneg %p50
        $region66: #{tpu_custom_call.1} parent=63 // pred_check_branch
          %422 = sbr.rel (%p420) target = $region68
        $region67: #{tpu_custom_call.1} parent=63 // pred_region
          %s423 = sand.u32 %s40, 1
          %s424 = scalar_lea.sflag [#allocation8], %s423
          %s425 = sand.u32 %s40, 1
          %s426 = scalar_lea.vmem [#allocation7], %s425
          %s428 = ssub.s32 16, 16
          %429 = vsyncadd %s424, %s428
          %s430 = smul.addr %s30, 16
          %s431 = scalar_lea.hbm %s0, %s430
          %s433 = sshll.u32 %s426, 4
          %s434 = int_to_ptr.vmem [resolvable:$true] %s433
          %436 = dma.hbm_to_vmem [thread:$0]  %s431, 16, %s434, %s424
        $region68: #{tpu_custom_call.1} parent=63 // pred_fallthru
          _
      $region64: #{tpu_custom_call.1} parent=5 // pred_fallthru
        _
      %p437 = scmp.le.s32.totalorder 1, %s30
      %p438 = scmp.lt.s32.totalorder %s30, 7
      %p439 = pnand %p437, %p438
      %p440 = pneg %p439
      // Predicated region
      $region69: #{tpu_custom_call.1} parent=5 // pred_check
        _
      $region70: #{tpu_custom_call.1} parent=5 // pred_check_branch
        %442 = sbr.rel (%p439) target = $region72
      $region71: #{tpu_custom_call.1} parent=5 // pred_region
        %s443 = ssub.s32 %s30, 1
        %s444 = sand.u32 %s43, 1
        %s445 = scalar_lea.sflag [#allocation8], %s444
        %s446 = sand.u32 %s43, 1
        %s447 = scalar_lea.vmem [#allocation7], %s446
        // Predicated region
        $region73: #{tpu_custom_call.1} parent=71 // pred_check
          %p448 = pneg %p56
        $region74: #{tpu_custom_call.1} parent=71 // pred_check_branch
          %450 = sbr.rel (%p448) target = $region76
        $region75: #{tpu_custom_call.1} parent=71 // pred_region
          %451 = dma.done %s445, 16
        $region76: #{tpu_custom_call.1} parent=71 // pred_fallthru
          _
        // Predicated region
        $region77: #{tpu_custom_call.1} parent=71 // pred_check
          %p452 = pneg %p98
        $region78: #{tpu_custom_call.1} parent=71 // pred_check_branch
          %454 = sbr.rel (%p452) target = $region80
        $region79: #{tpu_custom_call.1} parent=71 // pred_region
          %455 = dma.done [#allocation11], 128
        $region80: #{tpu_custom_call.1} parent=71 // pred_fallthru
          _
        %s456 = sand.u32 %s43, 1
        %s457 = scalar_lea.sflag [#allocation8], %s456
        %s458 = sand.u32 %s43, 1
        %s459 = scalar_lea.vmem [#allocation7], %s458
        %p460 = pneg %p56
        %p461 = pneg %p53
        %p462 = pneg %p77
        %p463 = pneg %p74
        %p464 = pneg %p98
        %p465 = pneg %p95
        %p466 = pneg %p119
        %p467 = pneg %p116
        %p468 = pneg %p140
        %p469 = pneg %p137
        %p470 = pneg %p161
        %p471 = pneg %p158
        %p472 = pneg %p182
        %p473 = pneg %p179
        %p474 = pneg %p203
        %p475 = pneg %p200
        %p476 = pneg %p224
        %p477 = pneg %p221
        %p478 = pneg %p245
        %p479 = pneg %p242
        %p480 = pneg %p266
        %p481 = pneg %p263
        %p482 = pneg %p287
        %p483 = pneg %p284
        %p484 = pneg %p308
        %p485 = pneg %p305
        %p486 = pneg %p334
        %p487 = pneg %p331
        %s488 = sand.u32 %s321, 1
        %s489 = scalar_lea.sflag [#allocation9], %s488
        %s490 = sand.u32 %s321, 1
        %s491 = smul.addr %s490, 2
        %s492 = scalar_lea.vmem [#allocation12], %s491
        %p493 = pneg %p355
        %p494 = pneg %p352
        %p496 = scmp.eq.s32.totalorder %s35, 0
        // Predicated region
        $region81: #{tpu_custom_call.1} parent=71 // pred_check
          %p497 = pneg %p496
        $region82: #{tpu_custom_call.1} parent=71 // pred_check_branch
          %499 = sbr.rel (%p497) target = $region84
        $region83: #{tpu_custom_call.1} parent=71 // pred_region
          %vm500 = vcmask 254976
          %501 = vst.msk [vmem:[#allocation2] sm:$0x3] %vm500, 0.0
          %502 = vst.msk [vmem:[#allocation3] sm:$0x3] %vm500, 0.0
        $region84: #{tpu_custom_call.1} parent=71 // pred_fallthru
          _
        %v503 = vld [vmem:[#allocation2] sm:$0x3]
        %v504 = vpack.c.bf16 %v503, %v503
        %v505 = vld [vmem:[%s3] sm:$0xff]
        %v506 = vld [vmem:[%s3 + $0x8] sm:$0xff]
        %v507 = vld [vmem:[%s3 + $0x10] sm:$0xff]
        %v508 = vld [vmem:[%s3 + $0x18] sm:$0xff]
        %v513 = vunpack.c.l.b16 %v505
        %v514 = vunpack.c.h.b16 %v505
        %v515 = vunpack.c.l.b16 %v506
        %v516 = vunpack.c.h.b16 %v506
        %v517 = vunpack.c.l.b16 %v507
        %v518 = vunpack.c.h.b16 %v507
        %v519 = vunpack.c.l.b16 %v508
        %v520 = vunpack.c.h.b16 %v508
        %v521 = vpack.c.b16 %v515, %v513
        %v522 = vpack.c.b16 %v516, %v514
        %v523 = vpack.c.b16 %v519, %v517
        %v524 = vpack.c.b16 %v520, %v518
        %vm529 = vcmask 261120
        %v531 = vsel %vm529, %v504, 0
        %533 = vmatprep.subr.bf16.mxu0 %v522
        %534 = vmatpush1.bf16.msra.mxu0 %v521
        %535 = vmatprep.subr.bf16.mxu0 %v524
        %536 = vmatpush1.bf16.msra.mxu0 %v523
        %537 = vmatprep.subr.bf16.mxu0 0
        %538 = vmatpush1.bf16.msra.mxu0 0
        %539 = vmatprep.subr.bf16.mxu0 0
        %540 = vmatpush1.bf16.msra.mxu0 0
        %541 = vmatprep.subr.bf16.mxu0 0
        %542 = vmatpush1.bf16.msra.mxu0 0
        %543 = vmatprep.subr.bf16.mxu0 0
        %544 = vmatpush1.bf16.msra.mxu0 0
        %545 = vmatprep.subr.bf16.mxu0 0
        %546 = vmatpush1.bf16.msra.mxu0 0
        %547 = vmatprep.subr.bf16.mxu0 0
        %548 = vmatpush1.bf16.msra.mxu0 0
        %549 = vmatprep.subr.bf16.mxu0 0
        %550 = vmatpush1.bf16.msra.mxu0 0
        %551 = vmatprep.subr.bf16.mxu0 0
        %552 = vmatpush1.bf16.msra.mxu0 0
        %553 = vmatprep.subr.bf16.mxu0 0
        %554 = vmatpush1.bf16.msra.mxu0 0
        %555 = vmatprep.subr.bf16.mxu0 0
        %556 = vmatpush1.bf16.msra.mxu0 0
        %557 = vmatprep.subr.bf16.mxu0 0
        %558 = vmatpush1.bf16.msra.mxu0 0
        %559 = vmatprep.subr.bf16.mxu0 0
        %560 = vmatpush1.bf16.msra.mxu0 0
        %561 = vmatprep.subr.bf16.mxu0 0
        %562 = vmatpush1.bf16.msra.mxu0 0
        %563 = vmatprep.subr.bf16.mxu0 0
        %564 = vmatpush1.bf16.msra.mxu0 0
        %565 = vmatprep.mubr.bf16.mxu0 0
        %566 = vmatmul.mubr.bf16.gmra.mrb[0].mxu0 %v531
        %v567 = vpop.f32.mrb[0].mxu0
        %v568 = vadd.f32 0.0, %v567
        %v569 = vpop.f32.mrb[0].mxu0
        %v570 = vadd.f32 0.0, %v569
        %v571 = vpop.f32.mrb[0].mxu0
        %v572 = vpop.f32.mrb[0].mxu0
        %573 = vdwg.mxu0
        %v574 = vld [vmem:[%s4] sm:$0x1]
        %v576 = vlaneseq
        %v577 = vshrl.u32 %v576, 7
        %v578 = vsub.s32 0, %v577
        %v579 = vrot.slane %v574, %v578
        %v581 = vadd.f32 %v570, %v579
        %v582 = vld [vmem:[#allocation10] sm:$0xf]
        %v583 = vld [vmem:[#allocation10 + $0x4] sm:$0xf]
        %v584 = vunpack.c.l.bf16 %v582
        %v585 = vunpack.c.l.bf16 %v583
        %v588 = vunpack.c.l.s4 1966171168
        %v589 = vunpack.c.0.s8 %v588
        %v590 = vlaneseq
        %v591 = vshrl.u32 %v590, 7
        %v592 = vsub.s32 %v589, %v591
        %v593 = vrot.slane %v581, %v592
        %v594 = vcombine.high %v593, %v593
        %v596 = vunpack.c.l.s4 1966171168
        %v597 = vunpack.c.0.s8 %v596
        %v598 = vlaneseq
        %v599 = vshrl.u32 %v598, 7
        %v600 = vsub.s32 %v597, %v599
        %v601 = vrot.slane %v593, %v600
        %v603 = vunpack.c.l.s4 1966171168
        %v604 = vunpack.c.0.s8 %v603
        %v605 = vlaneseq
        %v606 = vshrl.u32 %v605, 7
        %v607 = vsub.s32 %v604, %v606
        %v608 = vrot.slane %v594, %v607
        %v609 = vlaneseq
        %v610 = vshrl.u32 %v609, 7
        %v611 = vsub.s32 0, %v610
        %v612 = vrot.slane %v601, %v611
        %v613 = vlaneseq
        %v614 = vshrl.u32 %v613, 7
        %v615 = vsub.s32 0, %v614
        %v616 = vrot.slane %v608, %v615
        %v619 = vadd.f32 %v584, %v612
        %v620 = vadd.f32 %v585, %v616
        %v621 = vtanh.pop %v619
        %v622 = vtanh.pop %v620
        %v623 = vld [vmem:[%s5] sm:$0x1]
        %v625 = vlaneseq
        %v626 = vshrl.u32 %v625, 7
        %v627 = vsub.s32 0, %v626
        %v628 = vrot.slane %v623, %v627
        %v630 = vmul.f32 %v621, %v628
        %v631 = vmul.f32 %v622, %v628
        %v632 = vsel %vm529, %v630, 0.0
        %633 = vadd.xlane.f32.xlu0 %v632
        %v634 = vpop.xlane.xlu0 %633
        %v635 = vsel %vm529, %v631, 0.0
        %636 = vadd.xlane.f32.xlu0 %v635
        %v637 = vpop.xlane.xlu0 %636
        %v638 = vld [vmem:[#allocation6] sm:$0x1]
        %v640 = vlaneseq
        %v641 = vshrl.u32 %v640, 7
        %v642 = vsub.s32 0, %v641
        %v643 = vrot.slane %v638, %v642
        %644 = vset.pattern.permute.xlu0 0
        %645 = vperm.xlu0 %644, %v643
        %v646 = vpop.permute.xlu0 %645
        %v648 = vadd.f32 %v634, %v646
        %v649 = vadd.f32 %v637, %v646
        %v652 = vlaneseq
        %v653 = vand.u32 %v652, 127
        %v654 = vlaneseq
        %v655 = vshrl.u32 %v654, 7
        %v656 = vsub.s32 %v653, %v655
        %v657 = vrot.slane %v648, %v656
        %v658 = vlaneseq
        %v659 = vshrl.u32 %v658, 7
        %v660 = vsub.s32 %v653, %v659
        %v661 = vrot.slane %v649, %v660
        %vm662 = vcmask 1041409
        %v663 = vsel %vm662, %v661, %v657
        %vm665 = vcmask 58368
        %v666 = vsel %vm665, %v663, -inf
        %667 = vmax.xlane.f32.xlu0 %v666
        %v668 = vpop.xlane.xlu0 %667
        %v670 = vlaneseq
        %v671 = vshrl.u32 %v670, 7
        %v672 = vsub.s32 0, %v671
        %v673 = vrot.slane %v668, %v672
        %v674 = vlaneseq
        %v675 = vshrl.u32 %v674, 7
        %v676 = vsub.s32 1, %v675
        %v677 = vrot.slane %v668, %v676
        %v680 = vsub.f32 %v648, %v673
        %v681 = vsub.f32 %v649, %v677
        %v682 = vmul.f32 %v680, 1.442695
        %v683 = vpow.pop %v682
        %v684 = vmul.f32 %v681, 1.442695
        %v685 = vpow.pop %v684
        %688 = vset.pattern.permute.xlu0 0
        %689 = vperm.xlu0 %688, %v683
        %v690 = vpop.permute.xlu0 %689
        %691 = vset.pattern.permute.xlu0 0
        %692 = vperm.xlu0 %691, %v685
        %v693 = vpop.permute.xlu0 %692
        %v694 = vlaneseq
        %v695 = vshrl.u32 %v694, 7
        %v696 = vsub.s32 %v653, %v695
        %v697 = vrot.slane %v690, %v696
        %v698 = vlaneseq
        %v699 = vshrl.u32 %v698, 7
        %v700 = vsub.s32 %v653, %v699
        %v701 = vrot.slane %v693, %v700
        %v702 = vsel %vm662, %v701, %v697
        %v704 = vsel %vm665, %v702, 0.0
        %705 = vadd.xlane.f32.xlu0 %v704
        %v706 = vpop.xlane.xlu0 %705
        %v707 = vrcp.pop %v706
        %v709 = vlaneseq
        %v710 = vshrl.u32 %v709, 7
        %v711 = vsub.s32 0, %v710
        %v712 = vrot.slane %v707, %v711
        %v713 = vlaneseq
        %v714 = vshrl.u32 %v713, 7
        %v715 = vsub.s32 1, %v714
        %v716 = vrot.slane %v707, %v715
        %v719 = vmul.f32 %v683, %v712
        %v720 = vmul.f32 %v685, %v716
        %v721 = vld [vmem:[%s1] sm:$0xf]
        %v722 = vld [vmem:[%s1 + $0x4] sm:$0xf]
        %v723 = vunpack.c.l.bf16 %v721
        %v724 = vunpack.c.l.bf16 %v722
        %726 = vset.pattern.permute.xlu0 0
        %727 = vperm.xlu0 %726, %v719
        %v728 = vpop.permute.xlu0 %727
        %731 = vset.pattern.permute.xlu0 0
        %732 = vperm.xlu0 %731, %v720
        %v733 = vpop.permute.xlu0 %732
        %v735 = vmul.f32 %v728, %v723
        %v736 = vmul.f32 %v733, %v724
        %v737 = vsel %vm529, %v735, 0.0
        %v738 = vrot.slane %v737, 4
        %v739 = vadd.f32 %v737, %v738
        %v740 = vrot.slane %v739, 2
        %v741 = vadd.f32 %v739, %v740
        %v742 = vrot.slane %v741, 1
        %v743 = vadd.f32 %v741, %v742
        %v744 = vsel %vm529, %v736, 0.0
        %v745 = vrot.slane %v744, 4
        %v746 = vadd.f32 %v744, %v745
        %v747 = vrot.slane %v746, 2
        %v748 = vadd.f32 %v746, %v747
        %v749 = vrot.slane %v748, 1
        %v750 = vadd.f32 %v748, %v749
        %v751 = vld [vmem:[%s447] sm:$0x1]
        %v752 = vpack.c.bf16 %v743, %v743
        %v753 = vpack.c.bf16 %v750, %v750
        %v754 = vld [vmem:[%s7] sm:$0xf]
        %v755 = vld [vmem:[%s7 + $0x4] sm:$0xf]
        %v756 = vld [vmem:[%s7 + $0x8] sm:$0xf]
        %v757 = vld [vmem:[%s7 + $0xc] sm:$0xf]
        %v758 = vld [vmem:[%s8] sm:$0xf]
        %v759 = vld [vmem:[%s8 + $0x4] sm:$0xf]
        %v762 = vunpack.c.l.b16 %v758
        %v763 = vunpack.c.l.b16 %v759
        %v764 = vpack.c.b16 %v763, %v762
        %vm766 = vcmask 130048
        %v768 = vsel %vm766, %v751, 0
        %770 = vmatprep.subr.bf16.mxu0 0
        %771 = vmatpush1.bf16.msra.mxu0 %v764
        %772 = vmatprep.subr.bf16.mxu0 0
        %773 = vmatpush1.bf16.msra.mxu0 0
        %774 = vmatprep.subr.bf16.mxu0 0
        %775 = vmatpush1.bf16.msra.mxu0 0
        %776 = vmatprep.subr.bf16.mxu0 0
        %777 = vmatpush1.bf16.msra.mxu0 0
        %778 = vmatprep.subr.bf16.mxu0 0
        %779 = vmatpush1.bf16.msra.mxu0 0
        %780 = vmatprep.subr.bf16.mxu0 0
        %781 = vmatpush1.bf16.msra.mxu0 0
        %782 = vmatprep.subr.bf16.mxu0 0
        %783 = vmatpush1.bf16.msra.mxu0 0
        %784 = vmatprep.subr.bf16.mxu0 0
        %785 = vmatpush1.bf16.msra.mxu0 0
        %786 = vmatprep.subr.bf16.mxu0 0
        %787 = vmatpush1.bf16.msra.mxu0 0
        %788 = vmatprep.subr.bf16.mxu0 0
        %789 = vmatpush1.bf16.msra.mxu0 0
        %790 = vmatprep.subr.bf16.mxu0 0
        %791 = vmatpush1.bf16.msra.mxu0 0
        %792 = vmatprep.subr.bf16.mxu0 0
        %793 = vmatpush1.bf16.msra.mxu0 0
        %794 = vmatprep.subr.bf16.mxu0 0
        %795 = vmatpush1.bf16.msra.mxu0 0
        %796 = vmatprep.subr.bf16.mxu0 0
        %797 = vmatpush1.bf16.msra.mxu0 0
        %798 = vmatprep.subr.bf16.mxu0 0
        %799 = vmatpush1.bf16.msra.mxu0 0
        %800 = vmatprep.subr.bf16.mxu0 0
        %801 = vmatpush1.bf16.msra.mxu0 0
        %802 = vmatprep.mubr.bf16.mxu0 0
        %803 = vmatmul.mubr.bf16.gmra.mrb[0].mxu0 %v768
        %v804 = vpop.f32.mrb[0].mxu0
        %v805 = vadd.f32 0.0, %v804
        %v806 = vpop.f32.mrb[0].mxu0
        %v807 = vpop.f32.mrb[0].mxu0
        %v808 = vpop.f32.mrb[0].mxu0
        %809 = vdwg.mxu0
        %v812 = vunpack.c.l.b16 %v752
        %v813 = vunpack.c.l.b16 %v753
        %v814 = vsel %vm662, %v813, %v812
        %v815 = vpack.c.b16 %v814, %v814
        %v820 = vunpack.c.l.b16 %v754
        %v821 = vunpack.c.l.b16 %v755
        %v822 = vunpack.c.l.b16 %v756
        %v823 = vunpack.c.l.b16 %v757
        %v824 = vpack.c.b16 %v821, %v820
        %v825 = vpack.c.b16 %v823, %v822
        %v829 = vsel %vm529, %v815, 0
        %831 = vmatprep.subr.bf16.mxu0 0
        %832 = vmatpush1.bf16.msra.mxu0 %v824
        %833 = vmatprep.subr.bf16.mxu0 0
        %834 = vmatpush1.bf16.msra.mxu0 %v825
        %835 = vmatprep.subr.bf16.mxu0 0
        %836 = vmatpush1.bf16.msra.mxu0 0
        %837 = vmatprep.subr.bf16.mxu0 0
        %838 = vmatpush1.bf16.msra.mxu0 0
        %839 = vmatprep.subr.bf16.mxu0 0
        %840 = vmatpush1.bf16.msra.mxu0 0
        %841 = vmatprep.subr.bf16.mxu0 0
        %842 = vmatpush1.bf16.msra.mxu0 0
        %843 = vmatprep.subr.bf16.mxu0 0
        %844 = vmatpush1.bf16.msra.mxu0 0
        %845 = vmatprep.subr.bf16.mxu0 0
        %846 = vmatpush1.bf16.msra.mxu0 0
        %847 = vmatprep.subr.bf16.mxu0 0
        %848 = vmatpush1.bf16.msra.mxu0 0
        %849 = vmatprep.subr.bf16.mxu0 0
        %850 = vmatpush1.bf16.msra.mxu0 0
        %851 = vmatprep.subr.bf16.mxu0 0
        %852 = vmatpush1.bf16.msra.mxu0 0
        %853 = vmatprep.subr.bf16.mxu0 0
        %854 = vmatpush1.bf16.msra.mxu0 0
        %855 = vmatprep.subr.bf16.mxu0 0
        %856 = vmatpush1.bf16.msra.mxu0 0
        %857 = vmatprep.subr.bf16.mxu0 0
        %858 = vmatpush1.bf16.msra.mxu0 0
        %859 = vmatprep.subr.bf16.mxu0 0
        %860 = vmatpush1.bf16.msra.mxu0 0
        %861 = vmatprep.subr.bf16.mxu0 0
        %862 = vmatpush1.bf16.msra.mxu0 0
        %863 = vmatprep.mubr.bf16.mxu0 0
        %864 = vmatmul.mubr.bf16.gmra.mrb[0].mxu0 %v829
        %v865 = vpop.f32.mrb[0].mxu0
        %v866 = vadd.f32 %v805, %v865
        %v867 = vpop.f32.mrb[0].mxu0
        %v868 = vpop.f32.mrb[0].mxu0
        %v869 = vpop.f32.mrb[0].mxu0
        %870 = vdwg.mxu0
        %v871 = vadd.f32 %v866, %v568
        %v872 = vld [vmem:[%s9] sm:$0x1]
        %v874 = vlaneseq
        %v875 = vshrl.u32 %v874, 7
        %v876 = vsub.s32 0, %v875
        %v877 = vrot.slane %v872, %v876
        %v879 = vadd.f32 %v871, %v877
        %v880 = vxor.u32 %v879, 2147483648
        %v881 = vmul.f32 %v880, 1.442695
        %v882 = vpow.pop %v881
        %v883 = vadd.f32 %v882, 1.0
        %v884 = vrcp.pop %v883
        %v885 = vmul.f32 1.0, %v884
        %v886 = vtanh.pop %v879
        %v887 = vld [vmem:[#allocation3] sm:$0x3]
        %889 = vrot.lane.b32.xlu0 %v887, 32
        %v890 = vpop.permute.xlu0 %889
        %v892 = vmul.f32 %v885, %v890
        %894 = vrot.lane.b32.xlu0 %v886, 64
        %v895 = vpop.permute.xlu0 %894
        %v897 = vmul.f32 %v885, %v895
        %899 = vrot.lane.b32.xlu0 %v897, 32
        %v900 = vpop.permute.xlu0 %899
        %v902 = vadd.f32 %v892, %v900
        %v903 = vtanh.pop %v902
        %905 = vrot.lane.b32.xlu0 %v903, 64
        %v906 = vpop.permute.xlu0 %905
        %v908 = vmul.f32 %v885, %v906
        %910 = vrot.lane.b32.xlu0 %v902, 96
        %v911 = vpop.permute.xlu0 %910
        %vm913 = vcmask 254976
        %914 = vst.msk [vmem:[#allocation3] sm:$0x3] %vm913, %v911
        %916 = vrot.lane.b32.xlu0 %v908, 32
        %v917 = vpop.permute.xlu0 %916
        %919 = vst.msk [vmem:[#allocation2] sm:$0x3] %vm913, %v917
        %v920 = vpack.c.bf16 %v908, %v908
        %v921 = vld [vmem:[%s10] sm:$0xf]
        %v922 = vld [vmem:[%s10 + $0x4] sm:$0xf]
        %v923 = vld [vmem:[%s10 + $0x8] sm:$0xf]
        %v924 = vld [vmem:[%s10 + $0xc] sm:$0xf]
        %v925 = vld [vmem:[%s11] sm:$0x1]
        %v927 = vlaneseq
        %v928 = vshrl.u32 %v927, 7
        %v929 = vsub.s32 0, %v928
        %v930 = vrot.slane %v925, %v929
        %933 = vrot.lane.b32.xlu0 %v920, 32
        %v934 = vpop.permute.xlu0 %933
        %v939 = vunpack.c.l.b16 %v921
        %v940 = vunpack.c.l.b16 %v922
        %v941 = vunpack.c.l.b16 %v923
        %v942 = vunpack.c.l.b16 %v924
        %v943 = vpack.c.b16 %v940, %v939
        %v944 = vpack.c.b16 %v942, %v941
        %v948 = vsel %vm529, %v934, 0
        %950 = vmatprep.subr.bf16.mxu0 0
        %951 = vmatpush1.bf16.msra.mxu0 %v943
        %952 = vmatprep.subr.bf16.mxu0 0
        %953 = vmatpush1.bf16.msra.mxu0 %v944
        %954 = vmatprep.subr.bf16.mxu0 0
        %955 = vmatpush1.bf16.msra.mxu0 0
        %956 = vmatprep.subr.bf16.mxu0 0
        %957 = vmatpush1.bf16.msra.mxu0 0
        %958 = vmatprep.subr.bf16.mxu0 0
        %959 = vmatpush1.bf16.msra.mxu0 0
        %960 = vmatprep.subr.bf16.mxu0 0
        %961 = vmatpush1.bf16.msra.mxu0 0
        %962 = vmatprep.subr.bf16.mxu0 0
        %963 = vmatpush1.bf16.msra.mxu0 0
        %964 = vmatprep.subr.bf16.mxu0 0
        %965 = vmatpush1.bf16.msra.mxu0 0
        %966 = vmatprep.subr.bf16.mxu0 0
        %967 = vmatpush1.bf16.msra.mxu0 0
        %968 = vmatprep.subr.bf16.mxu0 0
        %969 = vmatpush1.bf16.msra.mxu0 0
        %970 = vmatprep.subr.bf16.mxu0 0
        %971 = vmatpush1.bf16.msra.mxu0 0
        %972 = vmatprep.subr.bf16.mxu0 0
        %973 = vmatpush1.bf16.msra.mxu0 0
        %974 = vmatprep.subr.bf16.mxu0 0
        %975 = vmatpush1.bf16.msra.mxu0 0
        %976 = vmatprep.subr.bf16.mxu0 0
        %977 = vmatpush1.bf16.msra.mxu0 0
        %978 = vmatprep.subr.bf16.mxu0 0
        %979 = vmatpush1.bf16.msra.mxu0 0
        %980 = vmatprep.subr.bf16.mxu0 0
        %981 = vmatpush1.bf16.msra.mxu0 0
        %982 = vmatprep.mubr.bf16.mxu0 0
        %983 = vmatmul.mubr.bf16.gmra.mrb[0].mxu0 %v948
        %v984 = vpop.f32.mrb[0].mxu0
        %v985 = vadd.f32 %v930, %v984
        %v986 = vpop.f32.mrb[0].mxu0
        %v987 = vpop.f32.mrb[0].mxu0
        %v988 = vpop.f32.mrb[0].mxu0
        %989 = vdwg.mxu0
        %990 = vst [vmem:[%s492] sm:$0x3] %v985
        %vm991 = vcmask 1041408
        %v992 = vsel %vm991, %v985, -inf
        %993 = vmax.xlane.f32.xlu0 %v992
        %v994 = vpop.xlane.xlu0 %993
        %vm995 = vcmp.eq.f32.partialorder %v985, %v994
        %v996 = vsel %vm995, %v653, 128
        %v997 = vsel %vm991, %v996, 2147483647
        %v998 = vand.u32 %v997, 65535
        %v999 = vshra.s32 %v997, 16
        %v1000 = vcvt.s32.f32 %v998
        %v1001 = vcvt.s32.f32 %v999
        %1002 = vmin.xlane.f32.xlu0 %v1001
        %v1003 = vpop.xlane.xlu0 %1002
        %vm1004 = vcmp.eq.f32.partialorder %v1001, %v1003
        %v1005 = vsel %vm1004, %v1000, inf
        %1006 = vmin.xlane.f32.xlu0 %v1005
        %v1007 = vpop.xlane.xlu0 %1006
        %v1008 = vcvt.f32.s32 %v1007
        %v1009 = vcvt.f32.s32 %v1003
        %v1010 = vshll.u32 %v1009, 16
        %v1011 = vadd.s32 %v1010, %v1008
        %s1012 = smul.u32 %s35, 2
        %s1013 = scalar_lea.vmem %s14, %s1012
        %vm1014 = vcmask 1024
        %1015 = vst.msk [vmem:[%s1013] sm:$0x3] %vm1014, %v1011
        %s1016 = sand.u32 %s321, 1
        %s1017 = scalar_lea.sflag [#allocation9], %s1016
        %s1018 = sand.u32 %s321, 1
        %s1019 = smul.addr %s1018, 2
        %s1020 = scalar_lea.vmem [#allocation12], %s1019
        // Predicated region
        $region85: #{tpu_custom_call.1} parent=71 // pred_check
          %p1021 = pneg %p331
        $region86: #{tpu_custom_call.1} parent=71 // pred_check_branch
          %1023 = sbr.rel (%p1021) target = $region88
        $region87: #{tpu_custom_call.1} parent=71 // pred_region
          %s1025 = ssub.s32 32, 32
          %1026 = vsyncadd %s1017, %s1025
          %s1027 = smul.addr %s35, 32
          %s1028 = scalar_lea.hbm %s13, %s1027
          %s1030 = sshll.u32 %s1020, 4
          %s1031 = int_to_ptr.vmem [resolvable:$true] %s1030
          %1033 = dma.vmem_to_hbm [thread:$0]  %s1031, 32, %s1028, %s1017
        $region88: #{tpu_custom_call.1} parent=71 // pred_fallthru
          _
        // Predicated region
        $region89: #{tpu_custom_call.1} parent=71 // pred_check
          %p1034 = pneg %p352
        $region90: #{tpu_custom_call.1} parent=71 // pred_check_branch
          %1036 = sbr.rel (%p1034) target = $region92
        $region91: #{tpu_custom_call.1} parent=71 // pred_region
          _
        $region92: #{tpu_custom_call.1} parent=71 // pred_fallthru
          _
        // Predicated region
        $region93: #{tpu_custom_call.1} parent=71 // pred_check
          %p1037 = pneg %p352
        $region94: #{tpu_custom_call.1} parent=71 // pred_check_branch
          %1039 = sbr.rel (%p1037) target = $region96
        $region95: #{tpu_custom_call.1} parent=71 // pred_region
          _
        $region96: #{tpu_custom_call.1} parent=71 // pred_fallthru
          _
      $region72: #{tpu_custom_call.1} parent=5 // pred_fallthru
        _
      %p1040 = scmp.le.s32.totalorder 2, %s30
      // Predicated region
      $region97: #{tpu_custom_call.1} parent=5 // pred_check
        %p1041 = pneg %p1040
      $region98: #{tpu_custom_call.1} parent=5 // pred_check_branch
        %1043 = sbr.rel (%p1041) target = $region100
      $region99: #{tpu_custom_call.1} parent=5 // pred_region
        %s1044 = ssub.s32 %s30, 2
        // Predicated region
        $region101: #{tpu_custom_call.1} parent=99 // pred_check
          %p1045 = pneg %p337
        $region102: #{tpu_custom_call.1} parent=99 // pred_check_branch
          %1047 = sbr.rel (%p1045) target = $region104
        $region103: #{tpu_custom_call.1} parent=99 // pred_region
          %s1048 = sand.u32 %s322, 1
          %s1049 = scalar_lea.sflag [#allocation9], %s1048
          %s1050 = sand.u32 %s322, 1
          %s1051 = smul.addr %s1050, 2
          %s1052 = scalar_lea.vmem [#allocation12], %s1051
          %1053 = dma.done %s1049, 32
        $region104: #{tpu_custom_call.1} parent=99 // pred_fallthru
          _
      $region100: #{tpu_custom_call.1} parent=5 // pred_fallthru
        _
    $region6: #{tpu_custom_call.1} parent=1 // loop_footer
      %s34 = sadd.s32 1, %s30
    $region7: #{tpu_custom_call.1} parent=1 // loop_footer_branch
      %29 = sbr.rel target = $region3
    $region8: #{tpu_custom_call.1} parent=1 // loop_exit
      _
    %1054 = vsyncpa [#allocation8], 1
    %s1055 = scalar_lea.sflag [#allocation8], 1
    %1056 = vsyncpa %s1055, 1
    %1057 = vsyncpa [#allocation11], 1
    %1058 = vsyncpa [#allocation9], 1
    %s1059 = scalar_lea.sflag [#allocation9], 1
    %1060 = vsyncpa %s1059, 1

</llo_original>
